<compile_context>
chip_gen: v6e
topology: v6e:2x2x1
jax: 0.10.0
libtpu: 0.0.40
codegen_flags: <defaults>
</compile_context>

<pallas_src>
import functools

import jax
import jax.numpy as jnp
from jax.experimental import pallas as pl
from jax.experimental.pallas import tpu as pltpu

EPS = 1e-6          # TODO(synk): confirm against the original RMSNorm module's eps.
LANE = 128
TM_ALIGN = 16       # bf16 sublane packing


def _round_up(n, m):
    return (n + m - 1) // m * m


def _pad2(a, rows, cols):
    return jnp.pad(a, ((0, rows - a.shape[0]), (0, cols - a.shape[1])))


# ------------------------------- kernel -------------------------------
def _mog_kernel(true_dims, eps, x_ref, *refs):
    """refs = ([w_i (bf16), bg_i (f32, rows=bias,gamma)] * n_hidden, w_out, b_out, out_ref).

    Padded activation lanes stay exactly zero (zero-padded weights/bias, silu(0)=0), so
    sum(h^2) over the padded width equals the sum over the true width; RMSNorm divides by
    the true width.
    """
    out_ref = refs[-1]
    params = refs[:-1]

    h = x_ref[...]                                  # bf16 (tm, D) or (tm, prev_pad)
    idx = 0
    for true_dim in true_dims:
        w = params[idx][...]                        # bf16 (in, out_pad)
        bg = params[idx + 1][...]                   # f32  (2, out_pad): [bias; gamma]
        idx += 2
        h = jnp.dot(h, w, preferred_element_type=jnp.float32) + bg[0:1, :]
        h = h * jax.nn.sigmoid(h)                   # SiLU in f32
        # TODO(synk): dropout (train mode) omitted — kernel implements eval/inference semantics.
        ms = jnp.sum(h * h, axis=-1, keepdims=True) * (1.0 / float(true_dim))
        h = (h * jax.lax.rsqrt(ms + eps) * bg[1:2, :]).astype(jnp.bfloat16)
    w = params[idx][...]                            # bf16 (in_pad, K_pad)
    b = params[idx + 1][...]                        # f32  (1, K_pad)
    out_ref[...] = jnp.dot(h, w, preferred_element_type=jnp.float32) + b


# ---------------------- one-time parameter preparation ----------------------
def prepare_mog_params(hidden_params, out_params):
    """Pad feature dims to multiples of 128, cast weights to bf16, pack (bias, gamma).

    hidden_params: list of (W[in,out] f32, b[1,out] f32, gamma[1,out] f32) (W pre-transposed).
    out_params:    (W_out[in,K] f32, b_out[1,K] f32).
    The first-layer contraction dim (top_dim) is left unpadded.
    """
    D = hidden_params[0][0].shape[0]
    hidden_dims = [w.shape[1] for (w, _, _) in hidden_params]
    K = out_params[0].shape[1]
    out_pads = [_round_up(d, LANE) for d in hidden_dims]
    K_pad = _round_up(K, LANE)

    flat = []
    in_dim = D
    for li, (w, b, g) in enumerate(hidden_params):
        op = out_pads[li]
        w_p = _pad2(jnp.asarray(w, jnp.float32), in_dim, op).astype(jnp.bfloat16)
        # bias padded with zeros (keeps padded lanes exactly zero); gamma pad value is irrelevant
        # because padded activation lanes are already zero.
        bg = jnp.concatenate(
            [_pad2(jnp.asarray(b, jnp.float32), 1, op),
             _pad2(jnp.asarray(g, jnp.float32), 1, op)], axis=0)
        flat += [w_p, bg]
        in_dim = op
    w_out, b_out = out_params
    flat += [
        _pad2(jnp.asarray(w_out, jnp.float32), in_dim, K_pad).astype(jnp.bfloat16),
        _pad2(jnp.asarray(b_out, jnp.float32), 1, K_pad),
    ]
    flat = tuple(jax.block_until_ready(p) for p in flat)   # materialize once, up front
    return {
        "flat": flat,
        "true_dims": tuple(hidden_dims),
        "top_dim": int(D),
        "out_pads": tuple(out_pads),
        "K": int(K),
        "K_pad": int(K_pad),
    }


# ---------------------- hardware-aware tiling helpers ----------------------
def _device_info():
    """Returns (vmem_capacity_bytes, has_two_tensorcores). Conservative fallbacks."""
    vmem_cap = 64 << 20          # v7x physical (smallest across generations)
    two_cores = False
    try:
        info = pltpu.get_tpu_info()
        vmem_cap = int(getattr(info, "vmem_capacity_bytes", vmem_cap))
        cores = getattr(info, "num_cores", None) or getattr(info, "tensorcores_per_chip", None)
        if cores is not None:
            two_cores = int(cores) >= 2
    except Exception:
        pass
    if not two_cores:
        try:
            kind = jax.local_devices()[0].device_kind.lower()
            two_cores = "v7" in kind
        except Exception:
            pass
    return vmem_cap, two_cores


def _choose_tm(batch, two_cores, tm_max=1024):
    """Single large tile on 1-TC chips (v5e/v6e). On 2-TC chips (v7x), split the batch into an
    EVEN number of grid steps so both TensorCores get equal work."""
    b_al = _round_up(max(batch, 1), TM_ALIGN)
    if not two_cores or batch < 2 * TM_ALIGN:
        return min(tm_max, b_al)
    min_steps = -(-b_al // tm_max)
    steps = max(2, _round_up(min_steps, 2))
    return max(TM_ALIGN, _round_up(-(-batch // steps), TM_ALIGN))


# ------------------------------- forward -------------------------------
def mog_predictor_pallas(x, prepared, *, tm=None, eps=EPS):
    """x: (B, top_dim) f32 (or bf16). prepared: output of prepare_mog_params."""
    B, D = x.shape
    assert D == prepared["top_dim"], (D, prepared["top_dim"])
    true_dims = prepared["true_dims"]
    out_pads = list(prepared["out_pads"])
    K, K_pad = prepared["K"], prepared["K_pad"]
    flat = prepared["flat"]

    vmem_cap, two_cores = _device_info()
    if tm is None:
        tm = _choose_tm(B, two_cores)
    tm = max(TM_ALIGN, _round_up(tm, TM_ALIGN))
    B_pad = _round_up(B, tm)

    x_bf = x.astype(jnp.bfloat16)
    if B_pad != B:
        x_bf = jnp.pad(x_bf, ((0, B_pad - B), (0, 0)))

    def _resident(shape):
        # Constant block across the grid: single-buffered (no pointless double buffering).
        return pl.BlockSpec(shape, lambda i: (0, 0), pipeline_mode=pl.Buffered(1))

    in_specs = [pl.BlockSpec((tm, D), lambda i: (i, 0))]   # bf16 x, unpadded contraction dim
    in_dim = D
    for op in out_pads:
        in_specs += [_resident((in_dim, op)), _resident((2, op))]
        in_dim = op
    in_specs += [_resident((in_dim, K_pad)), _resident((1, K_pad))]

    # VMEM budget: single-buffered params + double-buffered x/out tiles + in-flight activations.
    param_bytes = sum(int(p.size) * p.dtype.itemsize for p in flat)
    max_w = max(out_pads + [K_pad])
    est = (param_bytes
           + 2 * tm * D * 2            # x tile, double-buffered, bf16
           + 2 * tm * K_pad * 4        # out tile, double-buffered, f32
           + 6 * tm * max_w * 4)       # intermediate activations (f32 + bf16 copies), generous
    cap = max(vmem_cap - (8 << 20), 16 << 20)   # leave headroom below physical VMEM
    vmem_limit = int(min(max(est + (4 << 20), 16 << 20), cap))

    kernel = functools.partial(_mog_kernel, true_dims, float(eps))
    out_pad = pl.pallas_call(
        kernel,
        out_shape=jax.ShapeDtypeStruct((B_pad, K_pad), jnp.float32),
        grid=(B_pad // tm,),
        in_specs=in_specs,
        out_specs=pl.BlockSpec((tm, K_pad), lambda i: (i, 0)),
        compiler_params=pltpu.CompilerParams(
            dimension_semantics=("parallel",),
            vmem_limit_bytes=vmem_limit,
        ),
    )(x_bf, *flat)
    # NOTE: if the downstream consumer accepts bf16 / padded logits, this slice (and the f32
    # output) could be fused into the consumer to halve output writeback.
    return out_pad[:B, :K]


# ---------------------- pure-JAX reference (same numerics) ----------------------
def mog_predictor_ref(x, hidden_params, out_params, eps=EPS):
    h = x.astype(jnp.bfloat16)
    for (w, b, g) in hidden_params:
        h = jnp.dot(h, w.astype(jnp.bfloat16), preferred_element_type=jnp.float32) + b
        h = h * jax.nn.sigmoid(h)
        ms = jnp.mean(h * h, axis=-1, keepdims=True)
        h = (h * jax.lax.rsqrt(ms + eps) * g).astype(jnp.bfloat16)
    w, b = out_params
    return jnp.dot(h, w.astype(jnp.bfloat16), preferred_element_type=jnp.float32) + b


# ---------------------- deterministic parameter construction ----------------------
def init_params(key, top_dim, hidden_dims, num_components):
    """PyTorch-Linear-style init (uniform +/- 1/sqrt(fan_in)); RMSNorm gamma = ones.
    Weights returned pre-transposed as (in, out)."""
    hidden_params = []
    dims = [top_dim] + list(hidden_dims)
    for i in range(len(hidden_dims)):
        fan_in, fan_out = dims[i], dims[i + 1]
        key, kw, kb = jax.random.split(key, 3)
        bound = 1.0 / (fan_in ** 0.5)
        w = jax.random.uniform(kw, (fan_in, fan_out), jnp.float32, -bound, bound)
        b = jax.random.uniform(kb, (1, fan_out), jnp.float32, -bound, bound)
        g = jnp.ones((1, fan_out), jnp.float32)
        hidden_params.append((w, b, g))
    fan_in = dims[-1]
    key, kw, kb = jax.random.split(key, 3)
    bound = 1.0 / (fan_in ** 0.5)
    w_out = jax.random.uniform(kw, (fan_in, num_components), jnp.float32, -bound, bound)
    b_out = jax.random.uniform(kb, (1, num_components), jnp.float32, -bound, bound)
    return hidden_params, (w_out, b_out)


if __name__ == "__main__":
    TOP_DIM = 32
    HIDDEN_DIMS = [64, 64]
    NUM_COMPONENTS = 16
    BATCH = 32

    key = jax.random.PRNGKey(0)
    key, kx = jax.random.split(key)
    x = jax.random.normal(kx, (BATCH, TOP_DIM), jnp.float32)

    hidden_params, out_params = init_params(key, TOP_DIM, HIDDEN_DIMS, NUM_COMPONENTS)

    prepared = prepare_mog_params(hidden_params, out_params)   # one-time prep
    logits = mog_predictor_pallas(x, prepared)
    logits = jax.block_until_ready(logits)

    ref = mog_predictor_ref(x, hidden_params, out_params)
    assert logits.shape == (BATCH, NUM_COMPONENTS)
    max_err = float(jnp.max(jnp.abs(logits - ref)))
    assert max_err < 1e-3, f"mismatch vs pure-JAX reference (max abs err {max_err})"

    print("KERNEL_OK")
</pallas_src>

<mosaic_0001>
module attributes {stable_mosaic.version = 11 : i64} {
  func.func @_mog_kernel(%arg0: i32, %arg1: memref<32x32xbf16, #tpu.memory_space<vmem>>, %arg2: memref<32x128xbf16, #tpu.memory_space<vmem>>, %arg3: memref<2x128xf32, #tpu.memory_space<vmem>>, %arg4: memref<128x128xbf16, #tpu.memory_space<vmem>>, %arg5: memref<2x128xf32, #tpu.memory_space<vmem>>, %arg6: memref<128x128xbf16, #tpu.memory_space<vmem>>, %arg7: memref<1x128xf32, #tpu.memory_space<vmem>>, %arg8: memref<32x128xf32, #tpu.memory_space<vmem>>) attributes {dimension_semantics = [#tpu.dimension_semantics<parallel>], iteration_bounds = array<i64: 1>, scalar_prefetch = 0 : i64, scratch_operands = 0 : i64, tpu.core_type = #tpu.core_type<tc>, window_params = [{transform_indices = @transform_0, window_bounds = array<i64: 32, 32>}, {pipeline_mode = #tpu.pipeline_mode<synchronous>, transform_indices = @transform_1, window_bounds = array<i64: 32, 128>}, {pipeline_mode = #tpu.pipeline_mode<synchronous>, transform_indices = @transform_2, window_bounds = array<i64: 2, 128>}, {pipeline_mode = #tpu.pipeline_mode<synchronous>, transform_indices = @transform_3, window_bounds = array<i64: 128, 128>}, {pipeline_mode = #tpu.pipeline_mode<synchronous>, transform_indices = @transform_4, window_bounds = array<i64: 2, 128>}, {pipeline_mode = #tpu.pipeline_mode<synchronous>, transform_indices = @transform_5, window_bounds = array<i64: 128, 128>}, {pipeline_mode = #tpu.pipeline_mode<synchronous>, transform_indices = @transform_6, window_bounds = array<i64: 1, 128>}, {transform_indices = @transform_7, window_bounds = array<i64: 32, 128>}]} {
    %c0 = arith.constant 0 : index
    %c0_0 = arith.constant 0 : index
    %0 = vector.load %arg1[%c0, %c0_0] : memref<32x32xbf16, #tpu.memory_space<vmem>>, vector<32x32xbf16>
    %c0_1 = arith.constant 0 : index
    %c0_2 = arith.constant 0 : index
    %1 = vector.load %arg2[%c0_1, %c0_2] : memref<32x128xbf16, #tpu.memory_space<vmem>>, vector<32x128xbf16>
    %c0_3 = arith.constant 0 : index
    %c0_4 = arith.constant 0 : index
    %2 = vector.load %arg3[%c0_3, %c0_4] : memref<2x128xf32, #tpu.memory_space<vmem>>, vector<2x128xf32>
    %cst = arith.constant dense<0.000000e+00> : vector<32x128xf32>
    %3 = tpu.matmul %0, %1, %cst {dimension_numbers = #tpu.dot_dimension_numbers<[1], [0], [0], [1], [0, 0, 1, 1], [], []>} : vector<32x32xbf16>, vector<32x128xbf16>, vector<32x128xf32> -> vector<32x128xf32>
    %4 = vector.extract_strided_slice %2 {offsets = [0, 0], sizes = [1, 128], strides = [1, 1]} : vector<2x128xf32> to vector<1x128xf32>
    %5 = vector.broadcast %4 : vector<1x128xf32> to vector<32x128xf32>
    %6 = arith.addf %3, %5 : vector<32x128xf32>
    %7 = arith.negf %6 : vector<32x128xf32>
    %8 = math.exp %7 : vector<32x128xf32>
    %cst_5 = arith.constant 1.000000e+00 : f32
    %9 = vector.broadcast %cst_5 : f32 to vector<32x128xf32>
    %10 = arith.addf %9, %8 : vector<32x128xf32>
    %11 = arith.divf %9, %10 : vector<32x128xf32>
    %12 = arith.mulf %6, %11 : vector<32x128xf32>
    %13 = arith.mulf %12, %12 : vector<32x128xf32>
    %cst_6 = arith.constant dense<0.000000e+00> : vector<32xf32>
    %14 = vector.multi_reduction <add>, %13, %cst_6 [1] : vector<32x128xf32> to vector<32xf32>
    %15 = vector.shape_cast %14 : vector<32xf32> to vector<32x1xf32>
    %cst_7 = arith.constant 1.562500e-02 : f32
    %16 = vector.broadcast %cst_7 : f32 to vector<32x1xf32>
    %17 = arith.mulf %15, %16 : vector<32x1xf32>
    %cst_8 = arith.constant 9.99999997E-7 : f32
    %18 = vector.broadcast %cst_8 : f32 to vector<32x1xf32>
    %19 = arith.addf %17, %18 : vector<32x1xf32>
    %20 = math.rsqrt %19 : vector<32x1xf32>
    %21 = vector.broadcast %20 : vector<32x1xf32> to vector<32x128xf32>
    %22 = arith.mulf %12, %21 : vector<32x128xf32>
    %23 = vector.extract_strided_slice %2 {offsets = [1, 0], sizes = [1, 128], strides = [1, 1]} : vector<2x128xf32> to vector<1x128xf32>
    %24 = vector.broadcast %23 : vector<1x128xf32> to vector<32x128xf32>
    %25 = arith.mulf %22, %24 : vector<32x128xf32>
    %26 = arith.truncf %25 : vector<32x128xf32> to vector<32x128xbf16>
    %c0_9 = arith.constant 0 : index
    %c0_10 = arith.constant 0 : index
    %27 = vector.load %arg4[%c0_9, %c0_10] : memref<128x128xbf16, #tpu.memory_space<vmem>>, vector<128x128xbf16>
    %c0_11 = arith.constant 0 : index
    %c0_12 = arith.constant 0 : index
    %28 = vector.load %arg5[%c0_11, %c0_12] : memref<2x128xf32, #tpu.memory_space<vmem>>, vector<2x128xf32>
    %cst_13 = arith.constant dense<0.000000e+00> : vector<32x128xf32>
    %29 = tpu.matmul %26, %27, %cst_13 {dimension_numbers = #tpu.dot_dimension_numbers<[1], [0], [0], [1], [0, 0, 1, 1], [], []>} : vector<32x128xbf16>, vector<128x128xbf16>, vector<32x128xf32> -> vector<32x128xf32>
    %30 = vector.extract_strided_slice %28 {offsets = [0, 0], sizes = [1, 128], strides = [1, 1]} : vector<2x128xf32> to vector<1x128xf32>
    %31 = vector.broadcast %30 : vector<1x128xf32> to vector<32x128xf32>
    %32 = arith.addf %29, %31 : vector<32x128xf32>
    %33 = arith.negf %32 : vector<32x128xf32>
    %34 = math.exp %33 : vector<32x128xf32>
    %cst_14 = arith.constant 1.000000e+00 : f32
    %35 = vector.broadcast %cst_14 : f32 to vector<32x128xf32>
    %36 = arith.addf %35, %34 : vector<32x128xf32>
    %37 = arith.divf %35, %36 : vector<32x128xf32>
    %38 = arith.mulf %32, %37 : vector<32x128xf32>
    %39 = arith.mulf %38, %38 : vector<32x128xf32>
    %cst_15 = arith.constant dense<0.000000e+00> : vector<32xf32>
    %40 = vector.multi_reduction <add>, %39, %cst_15 [1] : vector<32x128xf32> to vector<32xf32>
    %41 = vector.shape_cast %40 : vector<32xf32> to vector<32x1xf32>
    %cst_16 = arith.constant 1.562500e-02 : f32
    %42 = vector.broadcast %cst_16 : f32 to vector<32x1xf32>
    %43 = arith.mulf %41, %42 : vector<32x1xf32>
    %cst_17 = arith.constant 9.99999997E-7 : f32
    %44 = vector.broadcast %cst_17 : f32 to vector<32x1xf32>
    %45 = arith.addf %43, %44 : vector<32x1xf32>
    %46 = math.rsqrt %45 : vector<32x1xf32>
    %47 = vector.broadcast %46 : vector<32x1xf32> to vector<32x128xf32>
    %48 = arith.mulf %38, %47 : vector<32x128xf32>
    %49 = vector.extract_strided_slice %28 {offsets = [1, 0], sizes = [1, 128], strides = [1, 1]} : vector<2x128xf32> to vector<1x128xf32>
    %50 = vector.broadcast %49 : vector<1x128xf32> to vector<32x128xf32>
    %51 = arith.mulf %48, %50 : vector<32x128xf32>
    %52 = arith.truncf %51 : vector<32x128xf32> to vector<32x128xbf16>
    %c0_18 = arith.constant 0 : index
    %c0_19 = arith.constant 0 : index
    %53 = vector.load %arg6[%c0_18, %c0_19] : memref<128x128xbf16, #tpu.memory_space<vmem>>, vector<128x128xbf16>
    %c0_20 = arith.constant 0 : index
    %c0_21 = arith.constant 0 : index
    %54 = vector.load %arg7[%c0_20, %c0_21] : memref<1x128xf32, #tpu.memory_space<vmem>>, vector<1x128xf32>
    %cst_22 = arith.constant dense<0.000000e+00> : vector<32x128xf32>
    %55 = tpu.matmul %52, %53, %cst_22 {dimension_numbers = #tpu.dot_dimension_numbers<[1], [0], [0], [1], [0, 0, 1, 1], [], []>} : vector<32x128xbf16>, vector<128x128xbf16>, vector<32x128xf32> -> vector<32x128xf32>
    %56 = vector.broadcast %54 : vector<1x128xf32> to vector<32x128xf32>
    %57 = arith.addf %55, %56 : vector<32x128xf32>
    %c0_23 = arith.constant 0 : index
    %c0_24 = arith.constant 0 : index
    %58 = vector.load %arg8[%c0_23, %c0_24] : memref<32x128xf32, #tpu.memory_space<vmem>>, vector<32x128xf32>
    tpu.vector_store %arg8[%c0_23, %c0_24], %57 {strides = array<i32>} : memref<32x128xf32, #tpu.memory_space<vmem>>, vector<32x128xf32>,
    return
  }
  func.func @transform_0(%arg0: i32) -> (i32, i32) {
    %c0_i32 = arith.constant 0 : i32
    %c0_i32_0 = arith.constant 0 : i32
    return %arg0, %c0_i32 : i32, i32
  }
  func.func @transform_1(%arg0: i32) -> (i32, i32) {
    %c0_i32 = arith.constant 0 : i32
    %c0_i32_0 = arith.constant 0 : i32
    %c0_i32_1 = arith.constant 0 : i32
    return %c0_i32, %c0_i32_0 : i32, i32
  }
  func.func @transform_2(%arg0: i32) -> (i32, i32) {
    %c0_i32 = arith.constant 0 : i32
    %c0_i32_0 = arith.constant 0 : i32
    %c0_i32_1 = arith.constant 0 : i32
    return %c0_i32, %c0_i32_0 : i32, i32
  }
  func.func @transform_3(%arg0: i32) -> (i32, i32) {
    %c0_i32 = arith.constant 0 : i32
    %c0_i32_0 = arith.constant 0 : i32
    %c0_i32_1 = arith.constant 0 : i32
    return %c0_i32, %c0_i32_0 : i32, i32
  }
  func.func @transform_4(%arg0: i32) -> (i32, i32) {
    %c0_i32 = arith.constant 0 : i32
    %c0_i32_0 = arith.constant 0 : i32
    %c0_i32_1 = arith.constant 0 : i32
    return %c0_i32, %c0_i32_0 : i32, i32
  }
  func.func @transform_5(%arg0: i32) -> (i32, i32) {
    %c0_i32 = arith.constant 0 : i32
    %c0_i32_0 = arith.constant 0 : i32
    %c0_i32_1 = arith.constant 0 : i32
    return %c0_i32, %c0_i32_0 : i32, i32
  }
  func.func @transform_6(%arg0: i32) -> (i32, i32) {
    %c0_i32 = arith.constant 0 : i32
    %c0_i32_0 = arith.constant 0 : i32
    %c0_i32_1 = arith.constant 0 : i32
    return %c0_i32, %c0_i32_0 : i32, i32
  }
  func.func @transform_7(%arg0: i32) -> (i32, i32) {
    %c0_i32 = arith.constant 0 : i32
    %c0_i32_0 = arith.constant 0 : i32
    return %arg0, %c0_i32 : i32, i32
  }
}

</mosaic_0001>

<llo_original>
// kernel: tpu_custom_call.1
$region0: #{tpu_custom_call.1}
  #allocation0 [shape = 'u32[]', space=smem, size = 0x4, offset = 0x4, fixed_abs, tag = 'smem constant byte address 0x4 - core index']
  #allocation1 [shape = 'u32[144,128]{1,0:T(1,128)}', space=vmem, size = 0x12000, scoped, tag = 'internal scratch']
  %s0 = inlined_call_operand.hbm [shape: bf16[32,32], index: 0, kind: input, shape index: {}]
  %s1 = inlined_call_operand.hbm [shape: bf16[32,128], index: 1, kind: input, shape index: {}]
  %s2 = inlined_call_operand.vmem [shape: f32[2,128], index: 2, kind: input, shape index: {}]
  %s3 = inlined_call_operand.hbm [shape: bf16[128,128], index: 3, kind: input, shape index: {}]
  %s4 = inlined_call_operand.vmem [shape: f32[2,128], index: 4, kind: input, shape index: {}]
  %s5 = inlined_call_operand.hbm [shape: bf16[128,128], index: 5, kind: input, shape index: {}]
  %s6 = inlined_call_operand.vmem [shape: f32[1,128], index: 6, kind: input, shape index: {}]
  %s7 = inlined_call_operand.hbm [shape: f32[32,128], index: 7, kind: output, shape index: {}]
  %s8 = sld [smem:[#allocation0]]
  $region54: #{tpu_custom_call.1} parent=0
    _
  %s10 = ssub.s32 1, %s8
  %s11 = scalar_select 0, %s10, %s8
  $region1: #{tpu_custom_call.1} parent=0
    #allocation2 [shape = 'u8[8192]{0}', space=vmem, size = 0x2000, scoped, tag = 'input window, operand 0, single buffered']
    #allocation3 [shape = 's32[1]{0}', space=sflag, size = 0x4, scoped, tag = 'scoped memory for tpu_custom_call.1']
    #allocation4 [shape = 's32[1]{0}', space=sflag, size = 0x4, scoped, tag = 'scoped memory for tpu_custom_call.1']
    #allocation5 [shape = 'u8[8192]{0}', space=vmem, size = 0x2000, scoped, tag = 'input window, operand 1, single buffered']
    #allocation6 [shape = 's32[1]{0}', space=sflag, size = 0x4, scoped, tag = 'scoped memory for tpu_custom_call.1']
    #allocation7 [shape = 'u8[32768]{0}', space=vmem, size = 0x8000, scoped, tag = 'input window, operand 3, single buffered']
    #allocation8 [shape = 'u8[32768]{0}', space=vmem, size = 0x8000, scoped, tag = 'input window, operand 5, single buffered']
    #allocation9 [shape = 's32[1]{0}', space=sflag, size = 0x4, scoped, tag = 'scoped memory for tpu_custom_call.1']
    #allocation10 [shape = 'u8[16384]{0}', space=vmem, size = 0x4000, scoped, tag = 'output window, operand 0, single buffered']
    %12 = vsyncpa [#allocation3], 0
    %13 = vsyncpa [#allocation6], 0
    %14 = vsyncpa [#allocation9], 0
    %15 = vsyncpa [#allocation4], 0
    // Predicated region
    $region2: #{tpu_custom_call.1} parent=1 // pred_check
      _
    $region3: #{tpu_custom_call.1} parent=1 // pred_check_branch
      %17 = sbr.rel (0) target = $region5
    $region4: #{tpu_custom_call.1} parent=1 // pred_region
      %s19 = ssub.s32 256, 256
      %20 = vsyncadd [#allocation3], %s19
      %s21 = sshll.u32 [#allocation2], 4
      %s22 = int_to_ptr.vmem [resolvable:$true] %s21
      %27 = dma.hbm_to_vmem [thread:$0]  %s0, 256, %s22, [#allocation3], 64, 64, 4
    $region5: #{tpu_custom_call.1} parent=1 // pred_fallthru
      _
    // Predicated region
    $region6: #{tpu_custom_call.1} parent=1 // pred_check
      _
    $region7: #{tpu_custom_call.1} parent=1 // pred_check_branch
      %29 = sbr.rel (0) target = $region9
    $region8: #{tpu_custom_call.1} parent=1 // pred_region
      %s31 = ssub.s32 256, 256
      %32 = vsyncadd [#allocation6], %s31
      %s33 = sshll.u32 [#allocation5], 4
      %s34 = int_to_ptr.vmem [resolvable:$true] %s33
      %39 = dma.hbm_to_vmem [thread:$0]  %s1, 256, %s34, [#allocation6], 64, 64, 4
    $region9: #{tpu_custom_call.1} parent=1 // pred_fallthru
      _
    // Predicated region
    $region10: #{tpu_custom_call.1} parent=1 // pred_check
      _
    $region11: #{tpu_custom_call.1} parent=1 // pred_check_branch
      %41 = sbr.rel (0) target = $region13
    $region12: #{tpu_custom_call.1} parent=1 // pred_region
      _
    $region13: #{tpu_custom_call.1} parent=1 // pred_fallthru
      _
    // Predicated region
    $region14: #{tpu_custom_call.1} parent=1 // pred_check
      _
    $region15: #{tpu_custom_call.1} parent=1 // pred_check_branch
      %43 = sbr.rel (0) target = $region17
    $region16: #{tpu_custom_call.1} parent=1 // pred_region
      %s45 = ssub.s32 1024, 1024
      %46 = vsyncadd [#allocation6], %s45
      %s47 = sshll.u32 [#allocation7], 4
      %s48 = int_to_ptr.vmem [resolvable:$true] %s47
      %53 = dma.hbm_to_vmem [thread:$0]  %s3, 1024, %s48, [#allocation6], 64, 64, 4
    $region17: #{tpu_custom_call.1} parent=1 // pred_fallthru
      _
    // Predicated region
    $region18: #{tpu_custom_call.1} parent=1 // pred_check
      _
    $region19: #{tpu_custom_call.1} parent=1 // pred_check_branch
      %55 = sbr.rel (0) target = $region21
    $region20: #{tpu_custom_call.1} parent=1 // pred_region
      _
    $region21: #{tpu_custom_call.1} parent=1 // pred_fallthru
      _
    // Predicated region
    $region22: #{tpu_custom_call.1} parent=1 // pred_check
      _
    $region23: #{tpu_custom_call.1} parent=1 // pred_check_branch
      %57 = sbr.rel (0) target = $region25
    $region24: #{tpu_custom_call.1} parent=1 // pred_region
      %s59 = ssub.s32 1024, 1024
      %60 = vsyncadd [#allocation9], %s59
      %s61 = sshll.u32 [#allocation8], 4
      %s62 = int_to_ptr.vmem [resolvable:$true] %s61
      %67 = dma.hbm_to_vmem [thread:$0]  %s5, 1024, %s62, [#allocation9], 64, 64, 4
    $region25: #{tpu_custom_call.1} parent=1 // pred_fallthru
      _
    // Predicated region
    $region26: #{tpu_custom_call.1} parent=1 // pred_check
      _
    $region27: #{tpu_custom_call.1} parent=1 // pred_check_branch
      %69 = sbr.rel (0) target = $region29
    $region28: #{tpu_custom_call.1} parent=1 // pred_region
      _
    $region29: #{tpu_custom_call.1} parent=1 // pred_fallthru
      _
    // Predicated region
    $region30: #{tpu_custom_call.1} parent=1 // pred_check
      _
    $region31: #{tpu_custom_call.1} parent=1 // pred_check_branch
      %71 = sbr.rel (0) target = $region33
    $region32: #{tpu_custom_call.1} parent=1 // pred_region
      %72 = dma.done [#allocation3], 256
    $region33: #{tpu_custom_call.1} parent=1 // pred_fallthru
      _
    // Predicated region
    $region34: #{tpu_custom_call.1} parent=1 // pred_check
      _
    $region35: #{tpu_custom_call.1} parent=1 // pred_check_branch
      %74 = sbr.rel (0) target = $region37
    $region36: #{tpu_custom_call.1} parent=1 // pred_region
      %75 = dma.done [#allocation6], 256
    $region37: #{tpu_custom_call.1} parent=1 // pred_fallthru
      _
    // Predicated region
    $region38: #{tpu_custom_call.1} parent=1 // pred_check
      _
    $region39: #{tpu_custom_call.1} parent=1 // pred_check_branch
      %77 = sbr.rel (0) target = $region41
    $region40: #{tpu_custom_call.1} parent=1 // pred_region
      %78 = dma.done [#allocation6], 1024
    $region41: #{tpu_custom_call.1} parent=1 // pred_fallthru
      _
    // Predicated region
    $region42: #{tpu_custom_call.1} parent=1 // pred_check
      _
    $region43: #{tpu_custom_call.1} parent=1 // pred_check_branch
      %80 = sbr.rel (0) target = $region45
    $region44: #{tpu_custom_call.1} parent=1 // pred_region
      %81 = dma.done [#allocation9], 1024
    $region45: #{tpu_custom_call.1} parent=1 // pred_fallthru
      _
    %v83 = vld [vmem:[#allocation2] sm:$0xf]
    %v84 = vld [vmem:[#allocation2 + $0x4] sm:$0xf]
    %v85 = vld [vmem:[#allocation2 + $0x8] sm:$0xf]
    %v86 = vld [vmem:[#allocation2 + $0xc] sm:$0xf]
    %v87 = vld [vmem:[#allocation5] sm:$0xf]
    %v88 = vld [vmem:[#allocation5 + $0x4] sm:$0xf]
    %v89 = vld [vmem:[#allocation5 + $0x8] sm:$0xf]
    %v90 = vld [vmem:[#allocation5 + $0xc] sm:$0xf]
    %v91 = vld [vmem:[%s2] sm:$0x3]
    %v92 = vlaneseq
    %v93 = vshrl.u32 %v92, 7
    %v94 = vsub.s32 0, %v93
    %v95 = vrot.slane %v91, %v94
    %v100 = vunpack.c.l.b16 %v83
    %v101 = vunpack.c.l.b16 %v84
    %v102 = vunpack.c.l.b16 %v85
    %v103 = vunpack.c.l.b16 %v86
    %v104 = vpack.c.b16 %v101, %v100
    %v105 = vpack.c.b16 %v103, %v102
    %v110 = vunpack.c.l.b16 %v87
    %v111 = vunpack.c.l.b16 %v88
    %v112 = vunpack.c.l.b16 %v89
    %v113 = vunpack.c.l.b16 %v90
    %v114 = vpack.c.b16 %v111, %v110
    %v115 = vpack.c.b16 %v113, %v112
    %vm118 = vcmask 261120
    %v120 = vsel %vm118, %v104, 0
    %v123 = vsel %vm118, %v105, 0
    %125 = vmatprep.subr.bf16.mxu0 0
    %126 = vmatpush1.bf16.msra.mxu0 0
    %127 = vmatprep.subr.bf16.mxu0 0
    %128 = vmatpush1.bf16.msra.mxu0 0
    %129 = vmatprep.subr.bf16.mxu0 0
    %130 = vmatpush1.bf16.msra.mxu0 0
    %131 = vmatprep.subr.bf16.mxu0 0
    %132 = vmatpush1.bf16.msra.mxu0 0
    %133 = vmatprep.subr.bf16.mxu0 0
    %134 = vmatpush1.bf16.msra.mxu0 0
    %135 = vmatprep.subr.bf16.mxu0 0
    %136 = vmatpush1.bf16.msra.mxu0 0
    %137 = vmatprep.subr.bf16.mxu0 0
    %138 = vmatpush1.bf16.msra.mxu0 %v115
    %139 = vmatprep.subr.bf16.mxu0 0
    %140 = vmatpush1.bf16.msra.mxu0 %v114
    %141 = vmatprep.subr.bf16.mxu0 0
    %142 = vmatpush2.bf16.msra.mxu0 0
    %143 = vmatprep.subr.bf16.mxu0 0
    %144 = vmatpush2.bf16.msra.mxu0 0
    %145 = vmatprep.subr.bf16.mxu0 0
    %146 = vmatpush2.bf16.msra.mxu0 0
    %147 = vmatprep.subr.bf16.mxu0 0
    %148 = vmatpush2.bf16.msra.mxu0 0
    %149 = vmatprep.subr.bf16.mxu0 0
    %150 = vmatpush2.bf16.msra.mxu0 0
    %151 = vmatprep.subr.bf16.mxu0 0
    %152 = vmatpush2.bf16.msra.mxu0 0
    %153 = vmatprep.subr.bf16.mxu0 0
    %154 = vmatpush2.bf16.msra.mxu0 0
    %155 = vmatprep.subr.bf16.mxu0 0
    %156 = vmatpush2.bf16.msra.mxu0 0
    %157 = vmatprep.mubr.bf16.mxu0 0
    %158 = vmatmul.mubr.bf16.gmra.mxu0 %v120
    %v159 = vpop.f32.mrf.mxu0
    %v160 = vadd.f32 %v95, %v159
    %v161 = vpop.f32.mrf.mxu0
    %v162 = vpop.f32.mrf.mxu0
    %v163 = vadd.f32 %v95, %v162
    %v164 = vpop.f32.mrf.mxu0
    %165 = vmatprep.mubr.bf16.mxu0 0
    %166 = vmatmul.mubr.bf16.gmra.mxu0 %v123
    %v167 = vpop.f32.mrf.mxu0
    %v168 = vadd.f32 %v95, %v167
    %v169 = vpop.f32.mrf.mxu0
    %v170 = vpop.f32.mrf.mxu0
    %v171 = vadd.f32 %v95, %v170
    %v172 = vpop.f32.mrf.mxu0
    %173 = vdwg.mxu0
    %v174 = vxor.u32 %v160, 2147483648
    %v175 = vxor.u32 %v163, 2147483648
    %v176 = vxor.u32 %v168, 2147483648
    %v177 = vxor.u32 %v171, 2147483648
    %v178 = vmul.f32 %v174, 1.442695
    %v179 = vpow.pop %v178
    %v180 = vmul.f32 %v175, 1.442695
    %v181 = vpow.pop %v180
    %v182 = vmul.f32 %v176, 1.442695
    %v183 = vpow.pop %v182
    %v184 = vmul.f32 %v177, 1.442695
    %v185 = vpow.pop %v184
    %v186 = vadd.f32 %v179, 1.0
    %v187 = vadd.f32 %v181, 1.0
    %v188 = vadd.f32 %v183, 1.0
    %v189 = vadd.f32 %v185, 1.0
    %v190 = vrcp.pop %v186
    %v191 = vmul.f32 1.0, %v190
    %v192 = vrcp.pop %v187
    %v193 = vmul.f32 1.0, %v192
    %v194 = vrcp.pop %v188
    %v195 = vmul.f32 1.0, %v194
    %v196 = vrcp.pop %v189
    %v197 = vmul.f32 1.0, %v196
    %v198 = vmul.f32 %v160, %v191
    %v199 = vmul.f32 %v163, %v193
    %v200 = vmul.f32 %v168, %v195
    %v201 = vmul.f32 %v171, %v197
    %v202 = vmul.f32 %v198, %v198
    %v203 = vmul.f32 %v199, %v199
    %v204 = vmul.f32 %v200, %v200
    %v205 = vmul.f32 %v201, %v201
    %206 = vadd.xlane.f32.xlu0 %v202
    %v207 = vpop.xlane.xlu0 %206
    %208 = vadd.xlane.f32.xlu0 %v203
    %v209 = vpop.xlane.xlu0 %208
    %210 = vadd.xlane.f32.xlu0 %v204
    %v211 = vpop.xlane.xlu0 %210
    %212 = vadd.xlane.f32.xlu0 %v205
    %v213 = vpop.xlane.xlu0 %212
    %v214 = vmul.f32 %v207, 0.015625
    %v215 = vmul.f32 %v209, 0.015625
    %v216 = vmul.f32 %v211, 0.015625
    %v217 = vmul.f32 %v213, 0.015625
    %v218 = vadd.f32 %v214, 1e-06
    %v219 = vadd.f32 %v215, 1e-06
    %v220 = vadd.f32 %v216, 1e-06
    %v221 = vadd.f32 %v217, 1e-06
    %v222 = vrsqrt.pop %v218
    %v223 = vrsqrt.pop %v219
    %v224 = vrsqrt.pop %v220
    %v225 = vrsqrt.pop %v221
    %v226 = vmul.f32 %v198, %v222
    %v227 = vmul.f32 %v199, %v223
    %v228 = vmul.f32 %v200, %v224
    %v229 = vmul.f32 %v201, %v225
    %v230 = vlaneseq
    %v231 = vshrl.u32 %v230, 7
    %v232 = vsub.s32 1, %v231
    %v233 = vrot.slane %v91, %v232
    %v234 = vmul.f32 %v226, %v233
    %v235 = vmul.f32 %v227, %v233
    %v236 = vmul.f32 %v228, %v233
    %v237 = vmul.f32 %v229, %v233
    %v238 = vpack.c.bf16 %v235, %v234
    %v239 = vpack.c.bf16 %v237, %v236
    %v240 = vld [vmem:[#allocation7] sm:$0xf]
    %v241 = vld [vmem:[#allocation7 + $0x4] sm:$0xf]
    %v242 = vld [vmem:[#allocation7 + $0x8] sm:$0xf]
    %v243 = vld [vmem:[#allocation7 + $0xc] sm:$0xf]
    %v244 = vld [vmem:[#allocation7 + $0x10] sm:$0xf]
    %v245 = vld [vmem:[#allocation7 + $0x14] sm:$0xf]
    %v246 = vld [vmem:[#allocation7 + $0x18] sm:$0xf]
    %v247 = vld [vmem:[#allocation7 + $0x1c] sm:$0xf]
    %v248 = vld [vmem:[#allocation7 + $0x20] sm:$0xf]
    %v249 = vld [vmem:[#allocation7 + $0x24] sm:$0xf]
    %v250 = vld [vmem:[#allocation7 + $0x28] sm:$0xf]
    %v251 = vld [vmem:[#allocation7 + $0x2c] sm:$0xf]
    %v252 = vld [vmem:[#allocation7 + $0x30] sm:$0xf]
    %v253 = vld [vmem:[#allocation7 + $0x34] sm:$0xf]
    %v254 = vld [vmem:[#allocation7 + $0x38] sm:$0xf]
    %v255 = vld [vmem:[#allocation7 + $0x3c] sm:$0xf]
    %v256 = vld [vmem:[%s4] sm:$0x3]
    %v257 = vlaneseq
    %v258 = vshrl.u32 %v257, 7
    %v259 = vsub.s32 0, %v258
    %v260 = vrot.slane %v256, %v259
    %v277 = vunpack.c.l.b16 %v240
    %v278 = vunpack.c.l.b16 %v241
    %v279 = vunpack.c.l.b16 %v242
    %v280 = vunpack.c.l.b16 %v243
    %v281 = vunpack.c.l.b16 %v244
    %v282 = vunpack.c.l.b16 %v245
    %v283 = vunpack.c.l.b16 %v246
    %v284 = vunpack.c.l.b16 %v247
    %v285 = vunpack.c.l.b16 %v248
    %v286 = vunpack.c.l.b16 %v249
    %v287 = vunpack.c.l.b16 %v250
    %v288 = vunpack.c.l.b16 %v251
    %v289 = vunpack.c.l.b16 %v252
    %v290 = vunpack.c.l.b16 %v253
    %v291 = vunpack.c.l.b16 %v254
    %v292 = vunpack.c.l.b16 %v255
    %v293 = vpack.c.b16 %v278, %v277
    %v294 = vpack.c.b16 %v280, %v279
    %v295 = vpack.c.b16 %v282, %v281
    %v296 = vpack.c.b16 %v284, %v283
    %v297 = vpack.c.b16 %v286, %v285
    %v298 = vpack.c.b16 %v288, %v287
    %v299 = vpack.c.b16 %v290, %v289
    %v300 = vpack.c.b16 %v292, %v291
    %309 = vmatprep.subr.bf16.mxu0 0
    %310 = vmatpush1.bf16.msra.mxu0 %v300
    %311 = vmatprep.subr.bf16.mxu0 0
    %312 = vmatpush1.bf16.msra.mxu0 %v299
    %313 = vmatprep.subr.bf16.mxu0 0
    %314 = vmatpush1.bf16.msra.mxu0 %v298
    %315 = vmatprep.subr.bf16.mxu0 0
    %316 = vmatpush1.bf16.msra.mxu0 %v297
    %317 = vmatprep.subr.bf16.mxu0 0
    %318 = vmatpush1.bf16.msra.mxu0 %v296
    %319 = vmatprep.subr.bf16.mxu0 0
    %320 = vmatpush1.bf16.msra.mxu0 %v295
    %321 = vmatprep.subr.bf16.mxu0 0
    %322 = vmatpush1.bf16.msra.mxu0 %v294
    %323 = vmatprep.subr.bf16.mxu0 0
    %324 = vmatpush1.bf16.msra.mxu0 %v293
    %325 = vmatprep.subr.bf16.mxu0 0
    %326 = vmatpush2.bf16.msra.mxu0 0
    %327 = vmatprep.subr.bf16.mxu0 0
    %328 = vmatpush2.bf16.msra.mxu0 0
    %329 = vmatprep.subr.bf16.mxu0 0
    %330 = vmatpush2.bf16.msra.mxu0 0
    %331 = vmatprep.subr.bf16.mxu0 0
    %332 = vmatpush2.bf16.msra.mxu0 0
    %333 = vmatprep.subr.bf16.mxu0 0
    %334 = vmatpush2.bf16.msra.mxu0 0
    %335 = vmatprep.subr.bf16.mxu0 0
    %336 = vmatpush2.bf16.msra.mxu0 0
    %337 = vmatprep.subr.bf16.mxu0 0
    %338 = vmatpush2.bf16.msra.mxu0 0
    %339 = vmatprep.subr.bf16.mxu0 0
    %340 = vmatpush2.bf16.msra.mxu0 0
    %341 = vmatprep.mubr.bf16.mxu0 0
    %342 = vmatmul.mubr.bf16.gmra.mxu0 %v238
    %v343 = vpop.f32.mrf.mxu0
    %v344 = vadd.f32 %v260, %v343
    %v345 = vpop.f32.mrf.mxu0
    %v346 = vpop.f32.mrf.mxu0
    %v347 = vadd.f32 %v260, %v346
    %v348 = vpop.f32.mrf.mxu0
    %349 = vmatprep.mubr.bf16.mxu0 0
    %350 = vmatmul.mubr.bf16.gmra.mxu0 %v239
    %v351 = vpop.f32.mrf.mxu0
    %v352 = vadd.f32 %v260, %v351
    %v353 = vpop.f32.mrf.mxu0
    %v354 = vpop.f32.mrf.mxu0
    %v355 = vadd.f32 %v260, %v354
    %v356 = vpop.f32.mrf.mxu0
    %357 = vdwg.mxu0
    %v358 = vxor.u32 %v344, 2147483648
    %v359 = vxor.u32 %v347, 2147483648
    %v360 = vxor.u32 %v352, 2147483648
    %v361 = vxor.u32 %v355, 2147483648
    %v362 = vmul.f32 %v358, 1.442695
    %v363 = vpow.pop %v362
    %v364 = vmul.f32 %v359, 1.442695
    %v365 = vpow.pop %v364
    %v366 = vmul.f32 %v360, 1.442695
    %v367 = vpow.pop %v366
    %v368 = vmul.f32 %v361, 1.442695
    %v369 = vpow.pop %v368
    %v370 = vadd.f32 %v363, 1.0
    %v371 = vadd.f32 %v365, 1.0
    %v372 = vadd.f32 %v367, 1.0
    %v373 = vadd.f32 %v369, 1.0
    %v374 = vrcp.pop %v370
    %v375 = vmul.f32 1.0, %v374
    %v376 = vrcp.pop %v371
    %v377 = vmul.f32 1.0, %v376
    %v378 = vrcp.pop %v372
    %v379 = vmul.f32 1.0, %v378
    %v380 = vrcp.pop %v373
    %v381 = vmul.f32 1.0, %v380
    %v382 = vmul.f32 %v344, %v375
    %v383 = vmul.f32 %v347, %v377
    %v384 = vmul.f32 %v352, %v379
    %v385 = vmul.f32 %v355, %v381
    %v386 = vmul.f32 %v382, %v382
    %v387 = vmul.f32 %v383, %v383
    %v388 = vmul.f32 %v384, %v384
    %v389 = vmul.f32 %v385, %v385
    %390 = vadd.xlane.f32.xlu0 %v386
    %v391 = vpop.xlane.xlu0 %390
    %392 = vadd.xlane.f32.xlu0 %v387
    %v393 = vpop.xlane.xlu0 %392
    %394 = vadd.xlane.f32.xlu0 %v388
    %v395 = vpop.xlane.xlu0 %394
    %396 = vadd.xlane.f32.xlu0 %v389
    %v397 = vpop.xlane.xlu0 %396
    %v398 = vmul.f32 %v391, 0.015625
    %v399 = vmul.f32 %v393, 0.015625
    %v400 = vmul.f32 %v395, 0.015625
    %v401 = vmul.f32 %v397, 0.015625
    %v402 = vadd.f32 %v398, 1e-06
    %v403 = vadd.f32 %v399, 1e-06
    %v404 = vadd.f32 %v400, 1e-06
    %v405 = vadd.f32 %v401, 1e-06
    %v406 = vrsqrt.pop %v402
    %v407 = vrsqrt.pop %v403
    %v408 = vrsqrt.pop %v404
    %v409 = vrsqrt.pop %v405
    %v410 = vmul.f32 %v382, %v406
    %v411 = vmul.f32 %v383, %v407
    %v412 = vmul.f32 %v384, %v408
    %v413 = vmul.f32 %v385, %v409
    %v414 = vlaneseq
    %v415 = vshrl.u32 %v414, 7
    %v416 = vsub.s32 1, %v415
    %v417 = vrot.slane %v256, %v416
    %v418 = vmul.f32 %v410, %v417
    %v419 = vmul.f32 %v411, %v417
    %v420 = vmul.f32 %v412, %v417
    %v421 = vmul.f32 %v413, %v417
    %v422 = vpack.c.bf16 %v419, %v418
    %v423 = vpack.c.bf16 %v421, %v420
    %v424 = vld [vmem:[#allocation8] sm:$0xf]
    %v425 = vld [vmem:[#allocation8 + $0x4] sm:$0xf]
    %v426 = vld [vmem:[#allocation8 + $0x8] sm:$0xf]
    %v427 = vld [vmem:[#allocation8 + $0xc] sm:$0xf]
    %v428 = vld [vmem:[#allocation8 + $0x10] sm:$0xf]
    %v429 = vld [vmem:[#allocation8 + $0x14] sm:$0xf]
    %v430 = vld [vmem:[#allocation8 + $0x18] sm:$0xf]
    %v431 = vld [vmem:[#allocation8 + $0x1c] sm:$0xf]
    %v432 = vld [vmem:[#allocation8 + $0x20] sm:$0xf]
    %v433 = vld [vmem:[#allocation8 + $0x24] sm:$0xf]
    %v434 = vld [vmem:[#allocation8 + $0x28] sm:$0xf]
    %v435 = vld [vmem:[#allocation8 + $0x2c] sm:$0xf]
    %v436 = vld [vmem:[#allocation8 + $0x30] sm:$0xf]
    %v437 = vld [vmem:[#allocation8 + $0x34] sm:$0xf]
    %v438 = vld [vmem:[#allocation8 + $0x38] sm:$0xf]
    %v439 = vld [vmem:[#allocation8 + $0x3c] sm:$0xf]
    %v440 = vld [vmem:[%s6] sm:$0x1]
    %v442 = vlaneseq
    %v443 = vshrl.u32 %v442, 7
    %v444 = vsub.s32 0, %v443
    %v445 = vrot.slane %v440, %v444
    %v463 = vunpack.c.l.b16 %v424
    %v464 = vunpack.c.l.b16 %v425
    %v465 = vunpack.c.l.b16 %v426
    %v466 = vunpack.c.l.b16 %v427
    %v467 = vunpack.c.l.b16 %v428
    %v468 = vunpack.c.l.b16 %v429
    %v469 = vunpack.c.l.b16 %v430
    %v470 = vunpack.c.l.b16 %v431
    %v471 = vunpack.c.l.b16 %v432
    %v472 = vunpack.c.l.b16 %v433
    %v473 = vunpack.c.l.b16 %v434
    %v474 = vunpack.c.l.b16 %v435
    %v475 = vunpack.c.l.b16 %v436
    %v476 = vunpack.c.l.b16 %v437
    %v477 = vunpack.c.l.b16 %v438
    %v478 = vunpack.c.l.b16 %v439
    %v479 = vpack.c.b16 %v464, %v463
    %v480 = vpack.c.b16 %v466, %v465
    %v481 = vpack.c.b16 %v468, %v467
    %v482 = vpack.c.b16 %v470, %v469
    %v483 = vpack.c.b16 %v472, %v471
    %v484 = vpack.c.b16 %v474, %v473
    %v485 = vpack.c.b16 %v476, %v475
    %v486 = vpack.c.b16 %v478, %v477
    %495 = vmatprep.subr.bf16.mxu0 0
    %496 = vmatpush1.bf16.msra.mxu0 %v486
    %497 = vmatprep.subr.bf16.mxu0 0
    %498 = vmatpush1.bf16.msra.mxu0 %v485
    %499 = vmatprep.subr.bf16.mxu0 0
    %500 = vmatpush1.bf16.msra.mxu0 %v484
    %501 = vmatprep.subr.bf16.mxu0 0
    %502 = vmatpush1.bf16.msra.mxu0 %v483
    %503 = vmatprep.subr.bf16.mxu0 0
    %504 = vmatpush1.bf16.msra.mxu0 %v482
    %505 = vmatprep.subr.bf16.mxu0 0
    %506 = vmatpush1.bf16.msra.mxu0 %v481
    %507 = vmatprep.subr.bf16.mxu0 0
    %508 = vmatpush1.bf16.msra.mxu0 %v480
    %509 = vmatprep.subr.bf16.mxu0 0
    %510 = vmatpush1.bf16.msra.mxu0 %v479
    %511 = vmatprep.subr.bf16.mxu0 0
    %512 = vmatpush2.bf16.msra.mxu0 0
    %513 = vmatprep.subr.bf16.mxu0 0
    %514 = vmatpush2.bf16.msra.mxu0 0
    %515 = vmatprep.subr.bf16.mxu0 0
    %516 = vmatpush2.bf16.msra.mxu0 0
    %517 = vmatprep.subr.bf16.mxu0 0
    %518 = vmatpush2.bf16.msra.mxu0 0
    %519 = vmatprep.subr.bf16.mxu0 0
    %520 = vmatpush2.bf16.msra.mxu0 0
    %521 = vmatprep.subr.bf16.mxu0 0
    %522 = vmatpush2.bf16.msra.mxu0 0
    %523 = vmatprep.subr.bf16.mxu0 0
    %524 = vmatpush2.bf16.msra.mxu0 0
    %525 = vmatprep.subr.bf16.mxu0 0
    %526 = vmatpush2.bf16.msra.mxu0 0
    %527 = vmatprep.mubr.bf16.mxu0 0
    %528 = vmatmul.mubr.bf16.gmra.mxu0 %v422
    %v529 = vpop.f32.mrf.mxu0
    %v530 = vadd.f32 %v445, %v529
    %v531 = vpop.f32.mrf.mxu0
    %v532 = vpop.f32.mrf.mxu0
    %v533 = vadd.f32 %v445, %v532
    %v534 = vpop.f32.mrf.mxu0
    %535 = vmatprep.mubr.bf16.mxu0 0
    %536 = vmatmul.mubr.bf16.gmra.mxu0 %v423
    %v537 = vpop.f32.mrf.mxu0
    %v538 = vadd.f32 %v445, %v537
    %v539 = vpop.f32.mrf.mxu0
    %v540 = vpop.f32.mrf.mxu0
    %v541 = vadd.f32 %v445, %v540
    %v542 = vpop.f32.mrf.mxu0
    %543 = vdwg.mxu0
    %544 = vst [vmem:[#allocation10] sm:$0xff] %v530
    %545 = vst [vmem:[#allocation10 + $0x8] sm:$0xff] %v533
    %546 = vst [vmem:[#allocation10 + $0x10] sm:$0xff] %v538
    %547 = vst [vmem:[#allocation10 + $0x18] sm:$0xff] %v541
    // Predicated region
    $region46: #{tpu_custom_call.1} parent=1 // pred_check
      _
    $region47: #{tpu_custom_call.1} parent=1 // pred_check_branch
      %549 = sbr.rel (0) target = $region49
    $region48: #{tpu_custom_call.1} parent=1 // pred_region
      %s551 = ssub.s32 512, 512
      %552 = vsyncadd [#allocation4], %s551
      %s553 = sshll.u32 [#allocation10], 4
      %s554 = int_to_ptr.vmem [resolvable:$true] %s553
      %559 = dma.vmem_to_hbm [thread:$0]  %s554, 512, %s7, [#allocation4], 128, 128, 8
    $region49: #{tpu_custom_call.1} parent=1 // pred_fallthru
      _
    // Predicated region
    $region50: #{tpu_custom_call.1} parent=1 // pred_check
      _
    $region51: #{tpu_custom_call.1} parent=1 // pred_check_branch
      %561 = sbr.rel (0) target = $region53
    $region52: #{tpu_custom_call.1} parent=1 // pred_region
      %562 = dma.done [#allocation4], 512
    $region53: #{tpu_custom_call.1} parent=1 // pred_fallthru
      _
    %563 = vsyncpa [#allocation3], 1
    %564 = vsyncpa [#allocation6], 1
    %565 = vsyncpa [#allocation9], 1
    %566 = vsyncpa [#allocation4], 1

</llo_original>
